<compile_context>
chip_gen: v7x
topology: tpu7x:2x2x1
jax: 0.10.0
libtpu: 0.0.40
codegen_flags: <defaults>
</compile_context>

<pallas_src>
import numpy as np
import jax
import jax.numpy as jnp
from jax import lax
from jax.experimental import pallas as pl
from jax.experimental.pallas import tpu as pltpu

NEG_INF = float("-inf")
ALIGN = 8          # aligned staging offset (sublane granule)

# (kernel_size, stride, padding, dilation, ceil_mode, return_indices)
POOL_SPECS = (
    (3, 3, 0, 1, False, False),
    (4, 2, 2, 1, False, False),
    (3, 1, 1, 1, False, False),
    (5, 2, 2, 1, True,  False),
    (3, 1, 1, 2, False, False),   # torch >= 1.12 branch (dilation=2)
    (2, 1, 0, 1, True,  False),
    (2, 2, 1, 1, False, True),    # -> indices1
    (5, 1, 2, 1, True,  True),    # -> indices2
)


def _out_len(L, k, s, p, d, ceil_mode):
    """PyTorch pooling_output_shape (static python ints)."""
    num = L + 2 * p - d * (k - 1) - 1
    if ceil_mode:
        Lo = -(-num // s) + 1
        if (Lo - 1) * s >= L + p:
            Lo -= 1
    else:
        Lo = num // s + 1
    return Lo


def _chain_lens(L_in):
    lens = [L_in]
    for (k, s, p, d, cm, _) in POOL_SPECS:
        lens.append(_out_len(lens[-1], k, s, p, d, cm))
    return lens


def _is_staged(k, s, p, d, L, touched):
    """Does this pool need the -inf VMEM staging scratch?"""
    return not (s == 1 and p == 0 and touched <= L)


def _scratch_rows(L_in):
    """Rows needed in the -inf staging scratch (static python int)."""
    need = ALIGN
    L = L_in
    for (k, s, p, d, cm, _) in POOL_SPECS:
        Lo = _out_len(L, k, s, p, d, cm)
        touched = (Lo - 1) * s + d * (k - 1) + 1
        if _is_staged(k, s, p, d, L, touched):
            pr = max(0, touched - (p + L))
            need = max(need, ALIGN + L + pr)
        L = Lo
    return -(-need // 8) * 8


def _pool_chain_kernel(x_ref, out_ref, idx1_ref, idx2_ref, pad_ref):
    """All 8 pools fused. In-kernel layout: spatial on sublanes, rows on lanes."""
    TR, L = x_ref.shape

    # Hoisted -inf block; also pre-fills the leading pad rows [0, ALIGN) once.
    # Every staged pool writes its data starting at row ALIGN, so leading pads
    # (p <= 2) stay -inf for the whole kernel.
    neg = jnp.full((ALIGN, TR), NEG_INF, jnp.float32)
    pad_ref[0:ALIGN, :] = neg

    # (TR, L) -> (L, TR): spatial on sublanes, N*C rows on lanes.
    x = x_ref[...].T

    idx1 = idx2 = None

    for (k, s, p, d, ceil_mode, want_idx) in POOL_SPECS:
        Lo = _out_len(L, k, s, p, d, ceil_mode)
        touched = (Lo - 1) * s + d * (k - 1) + 1   # last padded row read + 1

        if _is_staged(k, s, p, d, L, touched):
            # Aligned bulk store of the current value; only trailing pad rows
            # (<= 4) are filled explicitly, leading pads are the prefilled
            # rows [ALIGN - p, ALIGN).
            pad_ref[ALIGN:ALIGN + L, :] = x
            pr = touched - (p + L)
            if pr > 0:
                pad_ref[ALIGN + L:ALIGN + L + pr, :] = neg[:pr, :]

            def tap(j, s=s, d=d, p=p, Lo=Lo):
                start = ALIGN - p + j * d          # static python int
                if s == 1:
                    return pad_ref[start:start + Lo, :]
                # Sublane-strided read: rows start, start+s, ..., start+(Lo-1)*s
                return pad_ref[pl.ds(start, Lo, stride=s), :]
        else:
            # No padding, no stride: contiguous value slices, no staging.
            def tap(j, x=x, d=d, Lo=Lo):
                start = j * d
                return x[start:start + Lo, :]

        best = tap(0)
        if want_idx:
            jbest = jnp.zeros((Lo, TR), jnp.int32)
            for j in range(1, k):
                v = tap(j)
                upd = v > best                      # strict > => first-occurrence ties
                jbest = jnp.where(upd, jnp.int32(j), jbest)
                best = jnp.where(upd, v, best)
            oi = lax.broadcasted_iota(jnp.int32, (Lo, TR), 0)
            best_idx = oi * s + jbest * d - p       # one int mul-add, after the loop
            if idx1 is None:
                idx1 = best_idx
            else:
                idx2 = best_idx
        else:
            for j in range(1, k):
                best = jnp.maximum(best, tap(j))

        x = best
        L = Lo

    # Tiny outputs transposed back to (rows, Lo) so the wrapper needs no
    # transpose / slice.
    out_ref[...] = x.T
    idx1_ref[...] = idx1.T
    idx2_ref[...] = idx2.T


@jax.jit
def model_forward(x):
    # x: (N, C, L) float32, PyTorch NCL layout.
    N, C, L = x.shape
    R = N * C
    lens = _chain_lens(L)
    L7, L8 = lens[7], lens[8]      # indices1 length / final (and indices2) length

    # Row tiling: keep TR <= 128 (vreg pressure in the unrolled body) and give
    # large N*C a multi-step "parallel" grid (v7x megacore).
    Rp8 = -(-R // 8) * 8
    if Rp8 <= 128:
        Rp, TR = Rp8, Rp8
    else:
        Rp, TR = -(-R // 128) * 128, 128

    xr = x.reshape(R, L).astype(jnp.float32)        # free reshape, no transpose
    if Rp != R:
        xr = jnp.pad(xr, ((0, Rp - R), (0, 0)))

    out_r, idx1_r, idx2_r = pl.pallas_call(
        _pool_chain_kernel,
        grid=(Rp // TR,),
        out_shape=(
            jax.ShapeDtypeStruct((Rp, L8), jnp.float32),
            jax.ShapeDtypeStruct((Rp, L7), jnp.int32),
            jax.ShapeDtypeStruct((Rp, L8), jnp.int32),
        ),
        in_specs=[pl.BlockSpec((TR, L), lambda i: (i, 0))],
        out_specs=(
            pl.BlockSpec((TR, L8), lambda i: (i, 0)),
            pl.BlockSpec((TR, L7), lambda i: (i, 0)),
            pl.BlockSpec((TR, L8), lambda i: (i, 0)),
        ),
        scratch_shapes=[pltpu.VMEM((_scratch_rows(L), TR), jnp.float32)],
        compiler_params=pltpu.CompilerParams(
            dimension_semantics=("parallel",),
        ),
    )(xr)

    if Rp != R:
        out_r, idx1_r, idx2_r = out_r[:R], idx1_r[:R], idx2_r[:R]

    out = out_r.reshape(N, C, L8)
    idx1 = idx1_r.reshape(N, C, L7)    # int32 (exact); PyTorch would be int64
    idx2 = idx2_r.reshape(N, C, L8)
    return out, idx1, idx2


# ---------------- numpy reference (loop implementation) ----------------
def _ref_max_pool1d_np(x, k, s, p, d, ceil_mode, want_idx):
    N, C, L = x.shape
    Lo = _out_len(L, k, s, p, d, ceil_mode)
    out = np.empty((N, C, Lo), np.float32)
    idx = np.empty((N, C, Lo), np.int64)
    for n in range(N):
        for c in range(C):
            for o in range(Lo):
                vals, ids = [], []
                for j in range(k):
                    i = o * s + j * d - p
                    if 0 <= i < L:
                        vals.append(float(x[n, c, i]))
                    else:
                        vals.append(-np.inf)
                    ids.append(i)
                a = int(np.argmax(np.asarray(vals)))   # first occurrence
                out[n, c, o] = vals[a]
                idx[n, c, o] = ids[a]
    return (out, idx) if want_idx else (out, None)


def _ref_forward_np(x):
    idx1 = idx2 = None
    for (k, s, p, d, ceil_mode, want_idx) in POOL_SPECS:
        x, idx = _ref_max_pool1d_np(x, k, s, p, d, ceil_mode, want_idx)
        if want_idx:
            if idx1 is None:
                idx1 = idx
            else:
                idx2 = idx
    return x, idx1, idx2


if __name__ == "__main__":
    key = jax.random.PRNGKey(0)
    x = jax.random.normal(key, (2, 4, 128), dtype=jnp.float32)

    out, idx1, idx2 = model_forward(x)
    jax.block_until_ready((out, idx1, idx2))

    ref_out, ref_idx1, ref_idx2 = _ref_forward_np(np.asarray(x, dtype=np.float32))
    np.testing.assert_array_equal(np.asarray(out), ref_out)
    np.testing.assert_array_equal(np.asarray(idx1), ref_idx1.astype(np.int32))
    np.testing.assert_array_equal(np.asarray(idx2), ref_idx2.astype(np.int32))

    print("KERNEL_OK")
</pallas_src>

<mosaic_0001>
module attributes {stable_mosaic.version = 11 : i64} {
  func.func @_pool_chain_kernel(%arg0: i32, %arg1: memref<8x128xf32, #tpu.memory_space<vmem>>, %arg2: memref<8x5xf32, #tpu.memory_space<vmem>>, %arg3: memref<8x5xi32, #tpu.memory_space<vmem>>, %arg4: memref<8x5xi32, #tpu.memory_space<vmem>>, %arg5: memref<136x8xf32, #tpu.memory_space<vmem>>) attributes {dimension_semantics = [#tpu.dimension_semantics<parallel>], iteration_bounds = array<i64: 1>, scalar_prefetch = 0 : i64, scratch_operands = 1 : i64, tpu.core_type = #tpu.core_type<tc>, window_params = [{transform_indices = @transform_0, window_bounds = array<i64: 8, 128>}, {transform_indices = @transform_1, window_bounds = array<i64: 8, 5>}, {transform_indices = @transform_2, window_bounds = array<i64: 8, 5>}, {transform_indices = @transform_3, window_bounds = array<i64: 8, 5>}]} {
    %cst = arith.constant 0xFF800000 : f32
    %0 = vector.broadcast %cst : f32 to vector<8x8xf32>
    %c0 = arith.constant 0 : index
    %c0_0 = arith.constant 0 : index
    %1 = vector.load %arg5[%c0, %c0_0] : memref<136x8xf32, #tpu.memory_space<vmem>>, vector<8x8xf32>
    tpu.vector_store %arg5[%c0, %c0_0], %0 {strides = array<i32>} : memref<136x8xf32, #tpu.memory_space<vmem>>, vector<8x8xf32>,
    %c0_1 = arith.constant 0 : index
    %c0_2 = arith.constant 0 : index
    %2 = vector.load %arg1[%c0_1, %c0_2] : memref<8x128xf32, #tpu.memory_space<vmem>>, vector<8x128xf32>
    %3 = tpu.transpose %2, [1, 0] : vector<8x128xf32> -> vector<128x8xf32>
    %c8 = arith.constant 8 : index
    %c0_3 = arith.constant 0 : index
    %4 = vector.load %arg5[%c8, %c0_3] : memref<136x8xf32, #tpu.memory_space<vmem>>, vector<128x8xf32>
    tpu.vector_store %arg5[%c8, %c0_3], %3 {strides = array<i32>} : memref<136x8xf32, #tpu.memory_space<vmem>>, vector<128x8xf32>,
    %c8_4 = arith.constant 8 : index
    %c0_5 = arith.constant 0 : index
    %5 = tpu.strided_load %arg5[%c8_4, %c0_5] {strides = array<i32: 3, 1>} : memref<136x8xf32, #tpu.memory_space<vmem>>, vector<42x8xf32>
    %c9 = arith.constant 9 : index
    %c0_6 = arith.constant 0 : index
    %6 = tpu.strided_load %arg5[%c9, %c0_6] {strides = array<i32: 3, 1>} : memref<136x8xf32, #tpu.memory_space<vmem>>, vector<42x8xf32>
    %7 = arith.maximumf %5, %6 : vector<42x8xf32>
    %c10 = arith.constant 10 : index
    %c0_7 = arith.constant 0 : index
    %8 = tpu.strided_load %arg5[%c10, %c0_7] {strides = array<i32: 3, 1>} : memref<136x8xf32, #tpu.memory_space<vmem>>, vector<42x8xf32>
    %9 = arith.maximumf %7, %8 : vector<42x8xf32>
    %c8_8 = arith.constant 8 : index
    %c0_9 = arith.constant 0 : index
    %10 = vector.load %arg5[%c8_8, %c0_9] : memref<136x8xf32, #tpu.memory_space<vmem>>, vector<42x8xf32>
    tpu.vector_store %arg5[%c8_8, %c0_9], %9 {strides = array<i32>} : memref<136x8xf32, #tpu.memory_space<vmem>>, vector<42x8xf32>,
    %11 = vector.extract_strided_slice %0 {offsets = [0, 0], sizes = [2, 8], strides = [1, 1]} : vector<8x8xf32> to vector<2x8xf32>
    %c50 = arith.constant 50 : index
    %c0_10 = arith.constant 0 : index
    %12 = vector.load %arg5[%c50, %c0_10] : memref<136x8xf32, #tpu.memory_space<vmem>>, vector<2x8xf32>
    tpu.vector_store %arg5[%c50, %c0_10], %11 {strides = array<i32>} : memref<136x8xf32, #tpu.memory_space<vmem>>, vector<2x8xf32>,
    %c6 = arith.constant 6 : index
    %c0_11 = arith.constant 0 : index
    %13 = tpu.strided_load %arg5[%c6, %c0_11] {strides = array<i32: 2, 1>} : memref<136x8xf32, #tpu.memory_space<vmem>>, vector<22x8xf32>
    %c7 = arith.constant 7 : index
    %c0_12 = arith.constant 0 : index
    %14 = tpu.strided_load %arg5[%c7, %c0_12] {strides = array<i32: 2, 1>} : memref<136x8xf32, #tpu.memory_space<vmem>>, vector<22x8xf32>
    %15 = arith.maximumf %13, %14 : vector<22x8xf32>
    %c8_13 = arith.constant 8 : index
    %c0_14 = arith.constant 0 : index
    %16 = tpu.strided_load %arg5[%c8_13, %c0_14] {strides = array<i32: 2, 1>} : memref<136x8xf32, #tpu.memory_space<vmem>>, vector<22x8xf32>
    %17 = arith.maximumf %15, %16 : vector<22x8xf32>
    %c9_15 = arith.constant 9 : index
    %c0_16 = arith.constant 0 : index
    %18 = tpu.strided_load %arg5[%c9_15, %c0_16] {strides = array<i32: 2, 1>} : memref<136x8xf32, #tpu.memory_space<vmem>>, vector<22x8xf32>
    %19 = arith.maximumf %17, %18 : vector<22x8xf32>
    %c8_17 = arith.constant 8 : index
    %c0_18 = arith.constant 0 : index
    %20 = vector.load %arg5[%c8_17, %c0_18] : memref<136x8xf32, #tpu.memory_space<vmem>>, vector<22x8xf32>
    tpu.vector_store %arg5[%c8_17, %c0_18], %19 {strides = array<i32>} : memref<136x8xf32, #tpu.memory_space<vmem>>, vector<22x8xf32>,
    %21 = vector.extract_strided_slice %0 {offsets = [0, 0], sizes = [1, 8], strides = [1, 1]} : vector<8x8xf32> to vector<1x8xf32>
    %c30 = arith.constant 30 : index
    %c0_19 = arith.constant 0 : index
    %22 = vector.load %arg5[%c30, %c0_19] : memref<136x8xf32, #tpu.memory_space<vmem>>, vector<1x8xf32>
    tpu.vector_store %arg5[%c30, %c0_19], %21 {strides = array<i32>} : memref<136x8xf32, #tpu.memory_space<vmem>>, vector<1x8xf32>,
    %c7_20 = arith.constant 7 : index
    %c0_21 = arith.constant 0 : index
    %23 = vector.load %arg5[%c7_20, %c0_21] : memref<136x8xf32, #tpu.memory_space<vmem>>, vector<22x8xf32>
    %c8_22 = arith.constant 8 : index
    %c0_23 = arith.constant 0 : index
    %24 = vector.load %arg5[%c8_22, %c0_23] : memref<136x8xf32, #tpu.memory_space<vmem>>, vector<22x8xf32>
    %25 = arith.maximumf %23, %24 : vector<22x8xf32>
    %c9_24 = arith.constant 9 : index
    %c0_25 = arith.constant 0 : index
    %26 = vector.load %arg5[%c9_24, %c0_25] : memref<136x8xf32, #tpu.memory_space<vmem>>, vector<22x8xf32>
    %27 = arith.maximumf %25, %26 : vector<22x8xf32>
    %c8_26 = arith.constant 8 : index
    %c0_27 = arith.constant 0 : index
    %28 = vector.load %arg5[%c8_26, %c0_27] : memref<136x8xf32, #tpu.memory_space<vmem>>, vector<22x8xf32>
    tpu.vector_store %arg5[%c8_26, %c0_27], %27 {strides = array<i32>} : memref<136x8xf32, #tpu.memory_space<vmem>>, vector<22x8xf32>,
    %29 = vector.extract_strided_slice %0 {offsets = [0, 0], sizes = [3, 8], strides = [1, 1]} : vector<8x8xf32> to vector<3x8xf32>
    %c30_28 = arith.constant 30 : index
    %c0_29 = arith.constant 0 : index
    %30 = vector.load %arg5[%c30_28, %c0_29] : memref<136x8xf32, #tpu.memory_space<vmem>>, vector<3x8xf32>
    tpu.vector_store %arg5[%c30_28, %c0_29], %29 {strides = array<i32>} : memref<136x8xf32, #tpu.memory_space<vmem>>, vector<3x8xf32>,
    %c6_30 = arith.constant 6 : index
    %c0_31 = arith.constant 0 : index
    %31 = tpu.strided_load %arg5[%c6_30, %c0_31] {strides = array<i32: 2, 1>} : memref<136x8xf32, #tpu.memory_space<vmem>>, vector<12x8xf32>
    %c7_32 = arith.constant 7 : index
    %c0_33 = arith.constant 0 : index
    %32 = tpu.strided_load %arg5[%c7_32, %c0_33] {strides = array<i32: 2, 1>} : memref<136x8xf32, #tpu.memory_space<vmem>>, vector<12x8xf32>
    %33 = arith.maximumf %31, %32 : vector<12x8xf32>
    %c8_34 = arith.constant 8 : index
    %c0_35 = arith.constant 0 : index
    %34 = tpu.strided_load %arg5[%c8_34, %c0_35] {strides = array<i32: 2, 1>} : memref<136x8xf32, #tpu.memory_space<vmem>>, vector<12x8xf32>
    %35 = arith.maximumf %33, %34 : vector<12x8xf32>
    %c9_36 = arith.constant 9 : index
    %c0_37 = arith.constant 0 : index
    %36 = tpu.strided_load %arg5[%c9_36, %c0_37] {strides = array<i32: 2, 1>} : memref<136x8xf32, #tpu.memory_space<vmem>>, vector<12x8xf32>
    %37 = arith.maximumf %35, %36 : vector<12x8xf32>
    %c10_38 = arith.constant 10 : index
    %c0_39 = arith.constant 0 : index
    %38 = tpu.strided_load %arg5[%c10_38, %c0_39] {strides = array<i32: 2, 1>} : memref<136x8xf32, #tpu.memory_space<vmem>>, vector<12x8xf32>
    %39 = arith.maximumf %37, %38 : vector<12x8xf32>
    %c8_40 = arith.constant 8 : index
    %c0_41 = arith.constant 0 : index
    %40 = vector.load %arg5[%c8_40, %c0_41] : memref<136x8xf32, #tpu.memory_space<vmem>>, vector<12x8xf32>
    tpu.vector_store %arg5[%c8_40, %c0_41], %39 {strides = array<i32>} : memref<136x8xf32, #tpu.memory_space<vmem>>, vector<12x8xf32>,
    %41 = vector.extract_strided_slice %0 {offsets = [0, 0], sizes = [1, 8], strides = [1, 1]} : vector<8x8xf32> to vector<1x8xf32>
    %c20 = arith.constant 20 : index
    %c0_42 = arith.constant 0 : index
    %42 = vector.load %arg5[%c20, %c0_42] : memref<136x8xf32, #tpu.memory_space<vmem>>, vector<1x8xf32>
    tpu.vector_store %arg5[%c20, %c0_42], %41 {strides = array<i32>} : memref<136x8xf32, #tpu.memory_space<vmem>>, vector<1x8xf32>,
    %c7_43 = arith.constant 7 : index
    %c0_44 = arith.constant 0 : index
    %43 = vector.load %arg5[%c7_43, %c0_44] : memref<136x8xf32, #tpu.memory_space<vmem>>, vector<10x8xf32>
    %c9_45 = arith.constant 9 : index
    %c0_46 = arith.constant 0 : index
    %44 = vector.load %arg5[%c9_45, %c0_46] : memref<136x8xf32, #tpu.memory_space<vmem>>, vector<10x8xf32>
    %45 = arith.maximumf %43, %44 : vector<10x8xf32>
    %c11 = arith.constant 11 : index
    %c0_47 = arith.constant 0 : index
    %46 = vector.load %arg5[%c11, %c0_47] : memref<136x8xf32, #tpu.memory_space<vmem>>, vector<10x8xf32>
    %47 = arith.maximumf %45, %46 : vector<10x8xf32>
    %48 = vector.extract_strided_slice %47 {offsets = [0, 0], sizes = [9, 8], strides = [1, 1]} : vector<10x8xf32> to vector<9x8xf32>
    %49 = vector.extract_strided_slice %47 {offsets = [1, 0], sizes = [9, 8], strides = [1, 1]} : vector<10x8xf32> to vector<9x8xf32>
    %50 = arith.maximumf %48, %49 : vector<9x8xf32>
    %c8_48 = arith.constant 8 : index
    %c0_49 = arith.constant 0 : index
    %51 = vector.load %arg5[%c8_48, %c0_49] : memref<136x8xf32, #tpu.memory_space<vmem>>, vector<9x8xf32>
    tpu.vector_store %arg5[%c8_48, %c0_49], %50 {strides = array<i32>} : memref<136x8xf32, #tpu.memory_space<vmem>>, vector<9x8xf32>,
    %c7_50 = arith.constant 7 : index
    %c0_51 = arith.constant 0 : index
    %52 = tpu.strided_load %arg5[%c7_50, %c0_51] {strides = array<i32: 2, 1>} : memref<136x8xf32, #tpu.memory_space<vmem>>, vector<5x8xf32>
    %c0_i32 = arith.constant 0 : i32
    %53 = vector.broadcast %c0_i32 : i32 to vector<5x8xi32>
    %c8_52 = arith.constant 8 : index
    %c0_53 = arith.constant 0 : index
    %54 = tpu.strided_load %arg5[%c8_52, %c0_53] {strides = array<i32: 2, 1>} : memref<136x8xf32, #tpu.memory_space<vmem>>, vector<5x8xf32>
    %55 = arith.cmpf ogt, %54, %52 : vector<5x8xf32>
    %c1_i32 = arith.constant 1 : i32
    %56 = vector.broadcast %c1_i32 : i32 to vector<5x8xi32>
    %57 = arith.select %55, %56, %53 : vector<5x8xi1>, vector<5x8xi32>
    %58 = arith.select %55, %54, %52 : vector<5x8xi1>, vector<5x8xf32>
    %59 = tpu.iota {dimensions = array<i32: 0>} : vector<5x8xi32>
    %c2_i32 = arith.constant 2 : i32
    %60 = vector.broadcast %c2_i32 : i32 to vector<5x8xi32>
    %61 = arith.muli %59, %60 : vector<5x8xi32>
    %c1_i32_54 = arith.constant 1 : i32
    %62 = vector.broadcast %c1_i32_54 : i32 to vector<5x8xi32>
    %63 = arith.muli %57, %62 : vector<5x8xi32>
    %64 = arith.addi %61, %63 : vector<5x8xi32>
    %c1_i32_55 = arith.constant 1 : i32
    %65 = vector.broadcast %c1_i32_55 : i32 to vector<5x8xi32>
    %66 = arith.subi %64, %65 : vector<5x8xi32>
    %c8_56 = arith.constant 8 : index
    %c0_57 = arith.constant 0 : index
    %67 = vector.load %arg5[%c8_56, %c0_57] : memref<136x8xf32, #tpu.memory_space<vmem>>, vector<5x8xf32>
    tpu.vector_store %arg5[%c8_56, %c0_57], %58 {strides = array<i32>} : memref<136x8xf32, #tpu.memory_space<vmem>>, vector<5x8xf32>,
    %68 = vector.extract_strided_slice %0 {offsets = [0, 0], sizes = [2, 8], strides = [1, 1]} : vector<8x8xf32> to vector<2x8xf32>
    %c13 = arith.constant 13 : index
    %c0_58 = arith.constant 0 : index
    %69 = vector.load %arg5[%c13, %c0_58] : memref<136x8xf32, #tpu.memory_space<vmem>>, vector<2x8xf32>
    tpu.vector_store %arg5[%c13, %c0_58], %68 {strides = array<i32>} : memref<136x8xf32, #tpu.memory_space<vmem>>, vector<2x8xf32>,
    %c6_59 = arith.constant 6 : index
    %c0_60 = arith.constant 0 : index
    %70 = vector.load %arg5[%c6_59, %c0_60] : memref<136x8xf32, #tpu.memory_space<vmem>>, vector<5x8xf32>
    %c0_i32_61 = arith.constant 0 : i32
    %71 = vector.broadcast %c0_i32_61 : i32 to vector<5x8xi32>
    %c7_62 = arith.constant 7 : index
    %c0_63 = arith.constant 0 : index
    %72 = vector.load %arg5[%c7_62, %c0_63] : memref<136x8xf32, #tpu.memory_space<vmem>>, vector<5x8xf32>
    %73 = arith.cmpf ogt, %72, %70 : vector<5x8xf32>
    %c1_i32_64 = arith.constant 1 : i32
    %74 = vector.broadcast %c1_i32_64 : i32 to vector<5x8xi32>
    %75 = arith.select %73, %74, %71 : vector<5x8xi1>, vector<5x8xi32>
    %76 = arith.select %73, %72, %70 : vector<5x8xi1>, vector<5x8xf32>
    %c8_65 = arith.constant 8 : index
    %c0_66 = arith.constant 0 : index
    %77 = vector.load %arg5[%c8_65, %c0_66] : memref<136x8xf32, #tpu.memory_space<vmem>>, vector<5x8xf32>
    %78 = arith.cmpf ogt, %77, %76 : vector<5x8xf32>
    %c2_i32_67 = arith.constant 2 : i32
    %79 = vector.broadcast %c2_i32_67 : i32 to vector<5x8xi32>
    %80 = arith.select %78, %79, %75 : vector<5x8xi1>, vector<5x8xi32>
    %81 = arith.select %78, %77, %76 : vector<5x8xi1>, vector<5x8xf32>
    %c9_68 = arith.constant 9 : index
    %c0_69 = arith.constant 0 : index
    %82 = vector.load %arg5[%c9_68, %c0_69] : memref<136x8xf32, #tpu.memory_space<vmem>>, vector<5x8xf32>
    %83 = arith.cmpf ogt, %82, %81 : vector<5x8xf32>
    %c3_i32 = arith.constant 3 : i32
    %84 = vector.broadcast %c3_i32 : i32 to vector<5x8xi32>
    %85 = arith.select %83, %84, %80 : vector<5x8xi1>, vector<5x8xi32>
    %86 = arith.select %83, %82, %81 : vector<5x8xi1>, vector<5x8xf32>
    %c10_70 = arith.constant 10 : index
    %c0_71 = arith.constant 0 : index
    %87 = vector.load %arg5[%c10_70, %c0_71] : memref<136x8xf32, #tpu.memory_space<vmem>>, vector<5x8xf32>
    %88 = arith.cmpf ogt, %87, %86 : vector<5x8xf32>
    %c4_i32 = arith.constant 4 : i32
    %89 = vector.broadcast %c4_i32 : i32 to vector<5x8xi32>
    %90 = arith.select %88, %89, %85 : vector<5x8xi1>, vector<5x8xi32>
    %91 = arith.select %88, %87, %86 : vector<5x8xi1>, vector<5x8xf32>
    %92 = tpu.iota {dimensions = array<i32: 0>} : vector<5x8xi32>
    %c1_i32_72 = arith.constant 1 : i32
    %93 = vector.broadcast %c1_i32_72 : i32 to vector<5x8xi32>
    %94 = arith.muli %92, %93 : vector<5x8xi32>
    %c1_i32_73 = arith.constant 1 : i32
    %95 = vector.broadcast %c1_i32_73 : i32 to vector<5x8xi32>
    %96 = arith.muli %90, %95 : vector<5x8xi32>
    %97 = arith.addi %94, %96 : vector<5x8xi32>
    %c2_i32_74 = arith.constant 2 : i32
    %98 = vector.broadcast %c2_i32_74 : i32 to vector<5x8xi32>
    %99 = arith.subi %97, %98 : vector<5x8xi32>
    %100 = tpu.transpose %91, [1, 0] : vector<5x8xf32> -> vector<8x5xf32>
    %c0_75 = arith.constant 0 : index
    %c0_76 = arith.constant 0 : index
    %101 = vector.load %arg2[%c0_75, %c0_76] : memref<8x5xf32, #tpu.memory_space<vmem>>, vector<8x5xf32>
    tpu.vector_store %arg2[%c0_75, %c0_76], %100 {strides = array<i32>} : memref<8x5xf32, #tpu.memory_space<vmem>>, vector<8x5xf32>,
    %102 = tpu.transpose %66, [1, 0] : vector<5x8xi32> -> vector<8x5xi32>
    %c0_77 = arith.constant 0 : index
    %c0_78 = arith.constant 0 : index
    %103 = vector.load %arg3[%c0_77, %c0_78] : memref<8x5xi32, #tpu.memory_space<vmem>>, vector<8x5xi32>
    tpu.vector_store %arg3[%c0_77, %c0_78], %102 {strides = array<i32>} : memref<8x5xi32, #tpu.memory_space<vmem>>, vector<8x5xi32>,
    %104 = tpu.transpose %99, [1, 0] : vector<5x8xi32> -> vector<8x5xi32>
    %c0_79 = arith.constant 0 : index
    %c0_80 = arith.constant 0 : index
    %105 = vector.load %arg4[%c0_79, %c0_80] : memref<8x5xi32, #tpu.memory_space<vmem>>, vector<8x5xi32>
    tpu.vector_store %arg4[%c0_79, %c0_80], %104 {strides = array<i32>} : memref<8x5xi32, #tpu.memory_space<vmem>>, vector<8x5xi32>,
    return
  }
  func.func @transform_0(%arg0: i32) -> (i32, i32) {
    %c0_i32 = arith.constant 0 : i32
    %c0_i32_0 = arith.constant 0 : i32
    return %arg0, %c0_i32 : i32, i32
  }
  func.func @transform_1(%arg0: i32) -> (i32, i32) {
    %c0_i32 = arith.constant 0 : i32
    %c0_i32_0 = arith.constant 0 : i32
    return %arg0, %c0_i32 : i32, i32
  }
  func.func @transform_2(%arg0: i32) -> (i32, i32) {
    %c0_i32 = arith.constant 0 : i32
    %c0_i32_0 = arith.constant 0 : i32
    return %arg0, %c0_i32 : i32, i32
  }
  func.func @transform_3(%arg0: i32) -> (i32, i32) {
    %c0_i32 = arith.constant 0 : i32
    %c0_i32_0 = arith.constant 0 : i32
    return %arg0, %c0_i32 : i32, i32
  }
}

</mosaic_0001>

<llo_original>
// kernel: model_forward.1
$region0: #{model_forward.1}
  #allocation0 [shape = 'u32[]', space=smem, size = 0x4, offset = 0x4, fixed_abs, tag = 'smem constant byte address 0x4 - core index']
  #allocation1 [shape = 'u32[144,128]{1,0:T(1,128)}', space=vmem, size = 0x12000, scoped, tag = 'internal scratch']
  #allocation2 [shape = 'f32[136,8]{1,0:T(8,128)}', space=vmem, size = 0x11000, scoped, tag = 'scratch operand']
  %s0 = inlined_call_operand.hbm [shape: f32[8,128], index: 0, kind: input, shape index: {}]
  %s1 = inlined_call_operand.hbm [shape: f32[8,5], index: 1, kind: output, shape index: {0}]
  %s2 = inlined_call_operand.hbm [shape: s32[8,5], index: 2, kind: output, shape index: {1}]
  %s3 = inlined_call_operand.hbm [shape: s32[8,5], index: 3, kind: output, shape index: {2}]
  %4 = xla_tuple %s1, %s2, %s3
  %s5 = sld [smem:[#allocation0]]
  $region34: #{model_forward.1} parent=0
    _
  %s7 = ssub.s32 1, %s5
  %s8 = scalar_select 0, %s7, %s5
  $region1: #{model_forward.1} parent=0
    #allocation3 [shape = 'u8[4096]{0}', space=vmem, size = 0x1000, scoped, tag = 'input window, operand 0, single buffered']
    #allocation4 [shape = 's32[1]{0}', space=sflag, size = 0x4, scoped, tag = 'scoped memory for model_forward.1']
    #allocation5 [shape = 's32[1]{0}', space=sflag, size = 0x4, scoped, tag = 'scoped memory for model_forward.1']
    #allocation6 [shape = 'u8[4096]{0}', space=vmem, size = 0x1000, scoped, tag = 'output window, operand 0, single buffered']
    #allocation7 [shape = 'u8[4096]{0}', space=vmem, size = 0x1000, scoped, tag = 'output window, operand 1, single buffered']
    #allocation8 [shape = 's32[1]{0}', space=sflag, size = 0x4, scoped, tag = 'scoped memory for model_forward.1']
    #allocation9 [shape = 'u8[4096]{0}', space=vmem, size = 0x1000, scoped, tag = 'output window, operand 2, single buffered']
    %9 = vsyncpa [#allocation4], 0
    %10 = vsyncpa [#allocation5], 0
    %11 = vsyncpa [#allocation8], 0
    // Predicated region
    $region2: #{model_forward.1} parent=1 // pred_check
      _
    $region3: #{model_forward.1} parent=1 // pred_check_branch
      %13 = sbr.rel (0) target = $region5
    $region4: #{model_forward.1} parent=1 // pred_region
      %s15 = ssub.s32 128, 128
      %16 = vsyncadd [#allocation4], %s15
      %s18 = sshll.u32 [#allocation3], 4
      %s19 = int_to_ptr.vmem [resolvable:$true] %s18
      %21 = dma.hbm_to_vmem [thread:$0]  %s0, 128, %s19, [#allocation4]
    $region5: #{model_forward.1} parent=1 // pred_fallthru
      _
    // Predicated region
    $region6: #{model_forward.1} parent=1 // pred_check
      _
    $region7: #{model_forward.1} parent=1 // pred_check_branch
      %23 = sbr.rel (0) target = $region9
    $region8: #{model_forward.1} parent=1 // pred_region
      %24 = dma.done [#allocation4], 128
    $region9: #{model_forward.1} parent=1 // pred_fallthru
      _
    %vm25 = vcmask 64512
    %26 = vst.msk [vmem:[#allocation2] sm:$0xff] %vm25, -inf
    %v27 = vld [vmem:[#allocation3] sm:$0xff]
    %28 = vxpose.xlu0.b32.start [1/16] %v27, 128
    %29 = vxpose.xlu0.b32.cont [2/16] 0.0, 128
    %30 = vxpose.xlu0.b32.cont [3/16] 0.0, 128
    %31 = vxpose.xlu0.b32.cont [4/16] 0.0, 128
    %32 = vxpose.xlu0.b32.cont [5/16] 0.0, 128
    %33 = vxpose.xlu0.b32.cont [6/16] 0.0, 128
    %34 = vxpose.xlu0.b32.cont [7/16] 0.0, 128
    %35 = vxpose.xlu0.b32.cont [8/16] 0.0, 128
    %36 = vxpose.xlu0.b32.cont [9/16] 0.0, 128
    %37 = vxpose.xlu0.b32.cont [10/16] 0.0, 128
    %38 = vxpose.xlu0.b32.cont [11/16] 0.0, 128
    %39 = vxpose.xlu0.b32.cont [12/16] 0.0, 128
    %40 = vxpose.xlu0.b32.cont [13/16] 0.0, 128
    %41 = vxpose.xlu0.b32.cont [14/16] 0.0, 128
    %42 = vxpose.xlu0.b32.cont [15/16] 0.0, 128
    %43 = vxpose.xlu0.b32.end [16/16] 0.0, 128
    %v44 = vpop.trf.xlu0
    %v45 = vpop.trf.xlu0
    %v46 = vpop.trf.xlu0
    %v47 = vpop.trf.xlu0
    %v48 = vpop.trf.xlu0
    %v49 = vpop.trf.xlu0
    %v50 = vpop.trf.xlu0
    %v51 = vpop.trf.xlu0
    %v52 = vpop.trf.xlu0
    %v53 = vpop.trf.xlu0
    %v54 = vpop.trf.xlu0
    %v55 = vpop.trf.xlu0
    %v56 = vpop.trf.xlu0
    %v57 = vpop.trf.xlu0
    %v58 = vpop.trf.xlu0
    %v59 = vpop.trf.xlu0
    %60 = vst.msk [vmem:[#allocation2 + $0x8] sm:$0xff] %vm25, %v44
    %61 = vst.msk [vmem:[#allocation2 + $0x10] sm:$0xff] %vm25, %v45
    %62 = vst.msk [vmem:[#allocation2 + $0x18] sm:$0xff] %vm25, %v46
    %63 = vst.msk [vmem:[#allocation2 + $0x20] sm:$0xff] %vm25, %v47
    %64 = vst.msk [vmem:[#allocation2 + $0x28] sm:$0xff] %vm25, %v48
    %65 = vst.msk [vmem:[#allocation2 + $0x30] sm:$0xff] %vm25, %v49
    %66 = vst.msk [vmem:[#allocation2 + $0x38] sm:$0xff] %vm25, %v50
    %67 = vst.msk [vmem:[#allocation2 + $0x40] sm:$0xff] %vm25, %v51
    %68 = vst.msk [vmem:[#allocation2 + $0x48] sm:$0xff] %vm25, %v52
    %69 = vst.msk [vmem:[#allocation2 + $0x50] sm:$0xff] %vm25, %v53
    %70 = vst.msk [vmem:[#allocation2 + $0x58] sm:$0xff] %vm25, %v54
    %71 = vst.msk [vmem:[#allocation2 + $0x60] sm:$0xff] %vm25, %v55
    %72 = vst.msk [vmem:[#allocation2 + $0x68] sm:$0xff] %vm25, %v56
    %73 = vst.msk [vmem:[#allocation2 + $0x70] sm:$0xff] %vm25, %v57
    %74 = vst.msk [vmem:[#allocation2 + $0x78] sm:$0xff] %vm25, %v58
    %75 = vst.msk [vmem:[#allocation2 + $0x80] sm:$0xff] %vm25, %v59
    %s76 = scalar_lea.vmem [#allocation2], 8
    %v77 = vld [vmem:[%s76] ss:$3 sm:$0xff]
    %s78 = scalar_lea.vmem [#allocation2], 32
    %v79 = vld [vmem:[%s78] ss:$3 sm:$0xff]
    %s80 = scalar_lea.vmem [#allocation2], 56
    %v81 = vld [vmem:[%s80] ss:$3 sm:$0xff]
    %s82 = scalar_lea.vmem [#allocation2], 80
    %v83 = vld [vmem:[%s82] ss:$3 sm:$0xff]
    %s84 = scalar_lea.vmem [#allocation2], 104
    %v85 = vld [vmem:[%s84] ss:$3 sm:$0xff]
    %s86 = scalar_lea.vmem [#allocation2], 128
    %v87 = vld [vmem:[%s86] ss:$3 sm:$0x3]
    %s88 = scalar_lea.vmem [#allocation2], 9
    %v89 = vld [vmem:[%s88] ss:$3 sm:$0xff]
    %s90 = scalar_lea.vmem [#allocation2], 33
    %v91 = vld [vmem:[%s90] ss:$3 sm:$0xff]
    %s92 = scalar_lea.vmem [#allocation2], 57
    %v93 = vld [vmem:[%s92] ss:$3 sm:$0xff]
    %s94 = scalar_lea.vmem [#allocation2], 81
    %v95 = vld [vmem:[%s94] ss:$3 sm:$0xff]
    %s96 = scalar_lea.vmem [#allocation2], 105
    %v97 = vld [vmem:[%s96] ss:$3 sm:$0xff]
    %s98 = scalar_lea.vmem [#allocation2], 129
    %v99 = vld [vmem:[%s98] ss:$3 sm:$0x3]
    %v100 = vmax.f32 %v77, %v89
    %v101 = vmax.f32 %v79, %v91
    %v102 = vmax.f32 %v81, %v93
    %v103 = vmax.f32 %v83, %v95
    %v104 = vmax.f32 %v85, %v97
    %v105 = vmax.f32 %v87, %v99
    %s106 = scalar_lea.vmem [#allocation2], 10
    %v107 = vld [vmem:[%s106] ss:$3 sm:$0xff]
    %s108 = scalar_lea.vmem [#allocation2], 34
    %v109 = vld [vmem:[%s108] ss:$3 sm:$0xff]
    %s110 = scalar_lea.vmem [#allocation2], 58
    %v111 = vld [vmem:[%s110] ss:$3 sm:$0xff]
    %s112 = scalar_lea.vmem [#allocation2], 82
    %v113 = vld [vmem:[%s112] ss:$3 sm:$0xff]
    %s114 = scalar_lea.vmem [#allocation2], 106
    %v115 = vld [vmem:[%s114] ss:$3 sm:$0xff]
    %s116 = scalar_lea.vmem [#allocation2], 130
    %v117 = vld [vmem:[%s116] ss:$3 sm:$0x3]
    %v118 = vmax.f32 %v100, %v107
    %v119 = vmax.f32 %v101, %v109
    %v120 = vmax.f32 %v102, %v111
    %v121 = vmax.f32 %v103, %v113
    %v122 = vmax.f32 %v104, %v115
    %v123 = vmax.f32 %v105, %v117
    %124 = vst.msk [vmem:[#allocation2 + $0x8] sm:$0xff] %vm25, %v118
    %125 = vst.msk [vmem:[#allocation2 + $0x10] sm:$0xff] %vm25, %v119
    %126 = vst.msk [vmem:[#allocation2 + $0x18] sm:$0xff] %vm25, %v120
    %127 = vst.msk [vmem:[#allocation2 + $0x20] sm:$0xff] %vm25, %v121
    %128 = vst.msk [vmem:[#allocation2 + $0x28] sm:$0xff] %vm25, %v122
    %vm129 = vcmask 58368
    %130 = vst.msk [vmem:[#allocation2 + $0x30] sm:$0x3] %vm129, %v123
    %131 = vst.msk [vmem:[#allocation2 + $0x32] sm:$0x3] %vm129, -inf
    %s132 = scalar_lea.vmem [#allocation2], 6
    %v133 = vld [vmem:[%s132] ss:$2 sm:$0xff]
    %s134 = scalar_lea.vmem [#allocation2], 22
    %v135 = vld [vmem:[%s134] ss:$2 sm:$0xff]
    %s136 = scalar_lea.vmem [#allocation2], 38
    %v137 = vld [vmem:[%s136] ss:$2 sm:$0x3f]
    %s138 = scalar_lea.vmem [#allocation2], 7
    %v139 = vld [vmem:[%s138] ss:$2 sm:$0xff]
    %s140 = scalar_lea.vmem [#allocation2], 23
    %v141 = vld [vmem:[%s140] ss:$2 sm:$0xff]
    %s142 = scalar_lea.vmem [#allocation2], 39
    %v143 = vld [vmem:[%s142] ss:$2 sm:$0x3f]
    %v144 = vmax.f32 %v133, %v139
    %v145 = vmax.f32 %v135, %v141
    %v146 = vmax.f32 %v137, %v143
    %v147 = vld [vmem:[%s76] ss:$2 sm:$0xff]
    %s148 = scalar_lea.vmem [#allocation2], 24
    %v149 = vld [vmem:[%s148] ss:$2 sm:$0xff]
    %s150 = scalar_lea.vmem [#allocation2], 40
    %v151 = vld [vmem:[%s150] ss:$2 sm:$0x3f]
    %v152 = vmax.f32 %v144, %v147
    %v153 = vmax.f32 %v145, %v149
    %v154 = vmax.f32 %v146, %v151
    %v155 = vld [vmem:[%s88] ss:$2 sm:$0xff]
    %s156 = scalar_lea.vmem [#allocation2], 25
    %v157 = vld [vmem:[%s156] ss:$2 sm:$0xff]
    %s158 = scalar_lea.vmem [#allocation2], 41
    %v159 = vld [vmem:[%s158] ss:$2 sm:$0x3f]
    %v160 = vmax.f32 %v152, %v155
    %v161 = vmax.f32 %v153, %v157
    %v162 = vmax.f32 %v154, %v159
    %163 = vst.msk [vmem:[#allocation2 + $0x8] sm:$0xff] %vm25, %v160
    %164 = vst.msk [vmem:[#allocation2 + $0x10] sm:$0xff] %vm25, %v161
    %vm165 = vcmask 62464
    %166 = vst.msk [vmem:[#allocation2 + $0x18] sm:$0x3f] %vm165, %v162
    %vm167 = vcmask 57344
    %168 = vst.msk [vmem:[#allocation2 + $0x1e] sm:$0x1] %vm167, -inf
    %v169 = vld [vmem:[#allocation2 + $0x7] sm:$0xff]
    %v170 = vld [vmem:[#allocation2 + $0xf] sm:$0xff]
    %v171 = vld [vmem:[#allocation2 + $0x17] sm:$0x3f]
    %v172 = vld [vmem:[#allocation2 + $0x8] sm:$0xff]
    %v173 = vld [vmem:[#allocation2 + $0x10] sm:$0xff]
    %v174 = vld [vmem:[#allocation2 + $0x18] sm:$0x3f]
    %v175 = vmax.f32 %v169, %v172
    %v176 = vmax.f32 %v170, %v173
    %v177 = vmax.f32 %v171, %v174
    %v178 = vld [vmem:[#allocation2 + $0x9] sm:$0xff]
    %v179 = vld [vmem:[#allocation2 + $0x11] sm:$0xff]
    %v180 = vld [vmem:[#allocation2 + $0x19] sm:$0x3f]
    %v181 = vmax.f32 %v175, %v178
    %v182 = vmax.f32 %v176, %v179
    %v183 = vmax.f32 %v177, %v180
    %184 = vst.msk [vmem:[#allocation2 + $0x8] sm:$0xff] %vm25, %v181
    %185 = vst.msk [vmem:[#allocation2 + $0x10] sm:$0xff] %vm25, %v182
    %186 = vst.msk [vmem:[#allocation2 + $0x18] sm:$0x3f] %vm165, %v183
    %vm187 = vcmask 59392
    %188 = vst.msk [vmem:[#allocation2 + $0x1e] sm:$0x7] %vm187, -inf
    %v189 = vld [vmem:[%s132] ss:$2 sm:$0xff]
    %v190 = vld [vmem:[%s134] ss:$2 sm:$0xf]
    %v191 = vld [vmem:[%s138] ss:$2 sm:$0xff]
    %v192 = vld [vmem:[%s140] ss:$2 sm:$0xf]
    %v193 = vmax.f32 %v189, %v191
    %v194 = vmax.f32 %v190, %v192
    %v195 = vld [vmem:[%s76] ss:$2 sm:$0xff]
    %v196 = vld [vmem:[%s148] ss:$2 sm:$0xf]
    %v197 = vmax.f32 %v193, %v195
    %v198 = vmax.f32 %v194, %v196
    %v199 = vld [vmem:[%s88] ss:$2 sm:$0xff]
    %v200 = vld [vmem:[%s156] ss:$2 sm:$0xf]
    %v201 = vmax.f32 %v197, %v199
    %v202 = vmax.f32 %v198, %v200
    %v203 = vld [vmem:[%s106] ss:$2 sm:$0xff]
    %s204 = scalar_lea.vmem [#allocation2], 26
    %v205 = vld [vmem:[%s204] ss:$2 sm:$0xf]
    %v206 = vmax.f32 %v201, %v203
    %v207 = vmax.f32 %v202, %v205
    %208 = vst.msk [vmem:[#allocation2 + $0x8] sm:$0xff] %vm25, %v206
    %vm209 = vcmask 60416
    %210 = vst.msk [vmem:[#allocation2 + $0x10] sm:$0xf] %vm209, %v207
    %211 = vst.msk [vmem:[#allocation2 + $0x14] sm:$0x1] %vm167, -inf
    %v212 = vld [vmem:[#allocation2 + $0x7] sm:$0xff]
    %v213 = vld [vmem:[#allocation2 + $0xf] sm:$0x3]
    %v214 = vld [vmem:[#allocation2 + $0x9] sm:$0xff]
    %v215 = vld [vmem:[#allocation2 + $0x11] sm:$0x3]
    %v216 = vmax.f32 %v212, %v214
    %v217 = vmax.f32 %v213, %v215
    %v218 = vld [vmem:[#allocation2 + $0xb] sm:$0xff]
    %v219 = vld [vmem:[#allocation2 + $0x13] sm:$0x3]
    %v220 = vmax.f32 %v216, %v218
    %v221 = vmax.f32 %v217, %v219
    %vm224 = vcmask 1046528
    %v225 = vrot.slane %v220, 1
    %v226 = vrot.slane %v221, 1
    %v227 = vsel %vm224, %v225, %v226
    %v230 = vmax.f32 %v220, %v227
    %v231 = vmax.f32 %v221, %v226
    %232 = vst.msk [vmem:[#allocation2 + $0x8] sm:$0xff] %vm25, %v230
    %233 = vst.msk [vmem:[#allocation2 + $0x10] sm:$0x1] %vm167, %v231
    %v234 = vld [vmem:[%s138] ss:$2 sm:$0x1f]
    %v235 = vld [vmem:[%s76] ss:$2 sm:$0x1f]
    %vm236 = vcmp.gt.f32.partialorder %v235, %v234
    %v237 = vsel %vm236, 1, 0
    %v238 = vsel %vm236, %v235, %v234
    %v239 = vlaneseq
    %v240 = vshrl.u32 %v239, 7
    %v241 = vmul.u32 %v240, 2
    %v242 = vadd.s32 %v241, %v237
    %v243 = vsub.s32 %v242, 1
    %vm244 = vcmask 61440
    %245 = vst.msk [vmem:[#allocation2 + $0x8] sm:$0x1f] %vm244, %v238
    %246 = vst.msk [vmem:[#allocation2 + $0xd] sm:$0x3] %vm129, -inf
    %v247 = vld [vmem:[#allocation2 + $0x6] sm:$0x1f]
    %v248 = vld [vmem:[#allocation2 + $0x7] sm:$0x1f]
    %vm249 = vcmp.gt.f32.partialorder %v248, %v247
    %v250 = vsel %vm249, 1, 0
    %v251 = vsel %vm249, %v248, %v247
    %v252 = vld [vmem:[#allocation2 + $0x8] sm:$0x1f]
    %vm253 = vcmp.gt.f32.partialorder %v252, %v251
    %v254 = vsel %vm253, 2, %v250
    %v255 = vsel %vm253, %v252, %v251
    %v256 = vld [vmem:[#allocation2 + $0x9] sm:$0x1f]
    %vm257 = vcmp.gt.f32.partialorder %v256, %v255
    %v258 = vsel %vm257, 3, %v254
    %v259 = vsel %vm257, %v256, %v255
    %v260 = vld [vmem:[#allocation2 + $0xa] sm:$0x1f]
    %vm261 = vcmp.gt.f32.partialorder %v260, %v259
    %v262 = vsel %vm261, 4, %v258
    %v263 = vsel %vm261, %v260, %v259
    %v264 = vadd.s32 %v240, %v262
    %v265 = vsub.s32 %v264, 2
    %266 = vxpose.xlu0.b32.start [1/16] %v263, 128
    %267 = vxpose.xlu0.b32.cont [2/16] 0.0, 128
    %268 = vxpose.xlu0.b32.cont [3/16] 0.0, 128
    %269 = vxpose.xlu0.b32.cont [4/16] 0.0, 128
    %270 = vxpose.xlu0.b32.cont [5/16] 0.0, 128
    %271 = vxpose.xlu0.b32.cont [6/16] 0.0, 128
    %272 = vxpose.xlu0.b32.cont [7/16] 0.0, 128
    %273 = vxpose.xlu0.b32.cont [8/16] 0.0, 128
    %274 = vxpose.xlu0.b32.cont [9/16] 0.0, 128
    %275 = vxpose.xlu0.b32.cont [10/16] 0.0, 128
    %276 = vxpose.xlu0.b32.cont [11/16] 0.0, 128
    %277 = vxpose.xlu0.b32.cont [12/16] 0.0, 128
    %278 = vxpose.xlu0.b32.cont [13/16] 0.0, 128
    %279 = vxpose.xlu0.b32.cont [14/16] 0.0, 128
    %280 = vxpose.xlu0.b32.cont [15/16] 0.0, 128
    %281 = vxpose.xlu0.b32.end [16/16] 0.0, 128
    %v282 = vpop.trf.xlu0
    %v283 = vpop.trf.xlu0
    %v284 = vpop.trf.xlu0
    %v285 = vpop.trf.xlu0
    %v286 = vpop.trf.xlu0
    %v287 = vpop.trf.xlu0
    %v288 = vpop.trf.xlu0
    %v289 = vpop.trf.xlu0
    %v290 = vpop.trf.xlu0
    %v291 = vpop.trf.xlu0
    %v292 = vpop.trf.xlu0
    %v293 = vpop.trf.xlu0
    %v294 = vpop.trf.xlu0
    %v295 = vpop.trf.xlu0
    %v296 = vpop.trf.xlu0
    %v297 = vpop.trf.xlu0
    %vm298 = vcmask 39936
    %299 = vst.msk [vmem:[#allocation6] sm:$0xff] %vm298, %v282
    %300 = vxpose.xlu0.b32.start [1/16] %v243, 128
    %301 = vxpose.xlu0.b32.cont [2/16] 0, 128
    %302 = vxpose.xlu0.b32.cont [3/16] 0, 128
    %303 = vxpose.xlu0.b32.cont [4/16] 0, 128
    %304 = vxpose.xlu0.b32.cont [5/16] 0, 128
    %305 = vxpose.xlu0.b32.cont [6/16] 0, 128
    %306 = vxpose.xlu0.b32.cont [7/16] 0, 128
    %307 = vxpose.xlu0.b32.cont [8/16] 0, 128
    %308 = vxpose.xlu0.b32.cont [9/16] 0, 128
    %309 = vxpose.xlu0.b32.cont [10/16] 0, 128
    %310 = vxpose.xlu0.b32.cont [11/16] 0, 128
    %311 = vxpose.xlu0.b32.cont [12/16] 0, 128
    %312 = vxpose.xlu0.b32.cont [13/16] 0, 128
    %313 = vxpose.xlu0.b32.cont [14/16] 0, 128
    %314 = vxpose.xlu0.b32.cont [15/16] 0, 128
    %315 = vxpose.xlu0.b32.end [16/16] 0, 128
    %v316 = vpop.trf.xlu0
    %v317 = vpop.trf.xlu0
    %v318 = vpop.trf.xlu0
    %v319 = vpop.trf.xlu0
    %v320 = vpop.trf.xlu0
    %v321 = vpop.trf.xlu0
    %v322 = vpop.trf.xlu0
    %v323 = vpop.trf.xlu0
    %v324 = vpop.trf.xlu0
    %v325 = vpop.trf.xlu0
    %v326 = vpop.trf.xlu0
    %v327 = vpop.trf.xlu0
    %v328 = vpop.trf.xlu0
    %v329 = vpop.trf.xlu0
    %v330 = vpop.trf.xlu0
    %v331 = vpop.trf.xlu0
    %332 = vst.msk [vmem:[#allocation7] sm:$0xff] %vm298, %v316
    %333 = vxpose.xlu0.b32.start [1/16] %v265, 128
    %334 = vxpose.xlu0.b32.cont [2/16] 0, 128
    %335 = vxpose.xlu0.b32.cont [3/16] 0, 128
    %336 = vxpose.xlu0.b32.cont [4/16] 0, 128
    %337 = vxpose.xlu0.b32.cont [5/16] 0, 128
    %338 = vxpose.xlu0.b32.cont [6/16] 0, 128
    %339 = vxpose.xlu0.b32.cont [7/16] 0, 128
    %340 = vxpose.xlu0.b32.cont [8/16] 0, 128
    %341 = vxpose.xlu0.b32.cont [9/16] 0, 128
    %342 = vxpose.xlu0.b32.cont [10/16] 0, 128
    %343 = vxpose.xlu0.b32.cont [11/16] 0, 128
    %344 = vxpose.xlu0.b32.cont [12/16] 0, 128
    %345 = vxpose.xlu0.b32.cont [13/16] 0, 128
    %346 = vxpose.xlu0.b32.cont [14/16] 0, 128
    %347 = vxpose.xlu0.b32.cont [15/16] 0, 128
    %348 = vxpose.xlu0.b32.end [16/16] 0, 128
    %v349 = vpop.trf.xlu0
    %v350 = vpop.trf.xlu0
    %v351 = vpop.trf.xlu0
    %v352 = vpop.trf.xlu0
    %v353 = vpop.trf.xlu0
    %v354 = vpop.trf.xlu0
    %v355 = vpop.trf.xlu0
    %v356 = vpop.trf.xlu0
    %v357 = vpop.trf.xlu0
    %v358 = vpop.trf.xlu0
    %v359 = vpop.trf.xlu0
    %v360 = vpop.trf.xlu0
    %v361 = vpop.trf.xlu0
    %v362 = vpop.trf.xlu0
    %v363 = vpop.trf.xlu0
    %v364 = vpop.trf.xlu0
    %365 = vst.msk [vmem:[#allocation9] sm:$0xff] %vm298, %v349
    // Predicated region
    $region10: #{model_forward.1} parent=1 // pred_check
      _
    $region11: #{model_forward.1} parent=1 // pred_check_branch
      %367 = sbr.rel (0) target = $region13
    $region12: #{model_forward.1} parent=1 // pred_region
      %s369 = ssub.s32 128, 128
      %370 = vsyncadd [#allocation5], %s369
      %s372 = sshll.u32 [#allocation6], 4
      %s373 = int_to_ptr.vmem [resolvable:$true] %s372
      %375 = dma.vmem_to_hbm [thread:$0]  %s373, 128, %s1, [#allocation5]
    $region13: #{model_forward.1} parent=1 // pred_fallthru
      _
    // Predicated region
    $region14: #{model_forward.1} parent=1 // pred_check
      _
    $region15: #{model_forward.1} parent=1 // pred_check_branch
      %377 = sbr.rel (0) target = $region17
    $region16: #{model_forward.1} parent=1 // pred_region
      %s379 = ssub.s32 128, 128
      %380 = vsyncadd [#allocation8], %s379
      %s382 = sshll.u32 [#allocation7], 4
      %s383 = int_to_ptr.vmem [resolvable:$true] %s382
      %385 = dma.vmem_to_hbm [thread:$0]  %s383, 128, %s2, [#allocation8]
    $region17: #{model_forward.1} parent=1 // pred_fallthru
      _
    // Predicated region
    $region18: #{model_forward.1} parent=1 // pred_check
      _
    $region19: #{model_forward.1} parent=1 // pred_check_branch
      %387 = sbr.rel (0) target = $region21
    $region20: #{model_forward.1} parent=1 // pred_region
      %s389 = ssub.s32 128, 128
      %390 = vsyncadd [#allocation8], %s389
      %s392 = sshll.u32 [#allocation9], 4
      %s393 = int_to_ptr.vmem [resolvable:$true] %s392
      %395 = dma.vmem_to_hbm [thread:$0]  %s393, 128, %s3, [#allocation8]
    $region21: #{model_forward.1} parent=1 // pred_fallthru
      _
    // Predicated region
    $region22: #{model_forward.1} parent=1 // pred_check
      _
    $region23: #{model_forward.1} parent=1 // pred_check_branch
      %397 = sbr.rel (0) target = $region25
    $region24: #{model_forward.1} parent=1 // pred_region
      %398 = dma.done [#allocation5], 128
    $region25: #{model_forward.1} parent=1 // pred_fallthru
      _
    // Predicated region
    $region26: #{model_forward.1} parent=1 // pred_check
      _
    $region27: #{model_forward.1} parent=1 // pred_check_branch
      %400 = sbr.rel (0) target = $region29
    $region28: #{model_forward.1} parent=1 // pred_region
      %401 = dma.done [#allocation8], 128
    $region29: #{model_forward.1} parent=1 // pred_fallthru
      _
    // Predicated region
    $region30: #{model_forward.1} parent=1 // pred_check
      _
    $region31: #{model_forward.1} parent=1 // pred_check_branch
      %403 = sbr.rel (0) target = $region33
    $region32: #{model_forward.1} parent=1 // pred_region
      %404 = dma.done [#allocation8], 128
    $region33: #{model_forward.1} parent=1 // pred_fallthru
      _
    %405 = vsyncpa [#allocation4], 1
    %406 = vsyncpa [#allocation5], 1
    %407 = vsyncpa [#allocation8], 1

</llo_original>
